<compile_context>
chip_gen: v7x
topology: tpu7x:2x2x1
jax: 0.10.0
libtpu: 0.0.40
codegen_flags: <defaults>
</compile_context>

<pallas_src>
import functools

import jax
import jax.numpy as jnp
from jax import lax
from jax.experimental import pallas as pl
from jax.experimental.pallas import tpu as pltpu

IN_NODES = 48
H1 = 36
H2 = 28
OUT_NODES = 4

TILE_B = 128        # batch rows per grid step (fills MXU M dim on v5e)
PAD = 128           # padded lane width for hidden/output features
NEG_PAD = -1.0e30   # value of the padded output-bias lanes (never the row max)


def brain_kernel(x_ref, w1_ref, b1_ref, w2_ref, b2_ref, w3_ref, b3_ref, out_ref):
    """One batch tile of the full forward pass (all weights resident in VMEM).

    x_ref  : (TILE_B, 48)   f32
    w1_ref : (48, 128)  f32 (cols >= 36 are zero),  b1_ref : (1, 128)
    w2_ref : (128, 128) f32 (rows >= 36 / cols >= 28 zero), b2_ref : (1, 128)
    w3_ref : (128, 128) f32 (rows >= 28 / cols >= 4 zero),
    b3_ref : (1, 128)  f32 (lanes >= 4 are NEG_PAD -> never the argmax)
    out_ref: (TILE_B, 128) f32 one-hot over the first 4 lanes (lane-dense store)
    """
    x = x_ref[...]

    # Linear 1 + ReLU (padded lanes stay exactly 0: zero weights, zero bias).
    h1 = jnp.dot(x, w1_ref[...], preferred_element_type=jnp.float32) + b1_ref[...]
    h1 = jnp.maximum(h1, 0.0)

    # Linear 2 + ReLU
    h2 = jnp.dot(h1, w2_ref[...], preferred_element_type=jnp.float32) + b2_ref[...]
    h2 = jnp.maximum(h2, 0.0)

    # Linear 3 (sigmoid omitted: monotonic, argmax-invariant).
    # Padded lanes come out ~= NEG_PAD (zero weights + NEG_PAD bias), so no
    # explicit lane masking is required before the row-max reduction.
    logits = jnp.dot(h2, w3_ref[...], preferred_element_type=jnp.float32) + b3_ref[...]

    # First-occurrence argmax over the 4 real lanes (matches list.index(max(...))).
    lane = lax.broadcasted_iota(jnp.int32, logits.shape, dimension=1)
    row_max = jnp.max(logits, axis=-1, keepdims=True)
    candidate = jnp.where(logits == row_max, lane, PAD)        # non-max -> sentinel
    first_max = jnp.min(candidate, axis=-1, keepdims=True)     # first index of max
    out_ref[...] = (lane == first_max).astype(jnp.float32)     # lane-dense one-hot


@functools.partial(jax.jit, static_argnames=())
def brain_forward(x, params):
    """Batched forward. x: (B, 48) f32 -> (B, 4) f32 one-hot rows."""
    w1, b1, w2, b2, w3, b3 = params
    B = x.shape[0]

    # Pad batch up to a multiple of TILE_B (rows are independent).
    n_tiles = pl.cdiv(B, TILE_B)
    Bp = n_tiles * TILE_B
    if Bp != B:
        x = jnp.pad(x, ((0, Bp - B), (0, 0)))

    out_padded = pl.pallas_call(
        brain_kernel,
        out_shape=jax.ShapeDtypeStruct((Bp, PAD), jnp.float32),
        grid=(n_tiles,),
        in_specs=[
            pl.BlockSpec((TILE_B, IN_NODES), lambda i: (i, 0)),
            pl.BlockSpec((IN_NODES, PAD), lambda i: (0, 0)),
            pl.BlockSpec((1, PAD), lambda i: (0, 0)),
            pl.BlockSpec((PAD, PAD), lambda i: (0, 0)),
            pl.BlockSpec((1, PAD), lambda i: (0, 0)),
            pl.BlockSpec((PAD, PAD), lambda i: (0, 0)),
            pl.BlockSpec((1, PAD), lambda i: (0, 0)),
        ],
        out_specs=pl.BlockSpec((TILE_B, PAD), lambda i: (i, 0)),
        compiler_params=pltpu.CompilerParams(
            dimension_semantics=("parallel",)),
    )(x, w1, b1, w2, b2, w3, b3)

    return out_padded[:B, :OUT_NODES]


def init_brain_params(key):
    """nn.Linear-style init (uniform +-1/sqrt(fan_in)), zero-padded to
    MXU-friendly shapes once at init time. Weights stored transposed: (in, out).
    The padded lanes of the last bias are NEG_PAD so the kernel can argmax
    without masking."""
    ks = jax.random.split(key, 6)

    def linear(kw, kb, fan_in, fan_out, pad_in, pad_out, bias_pad_value=0.0):
        bound = 1.0 / jnp.sqrt(float(fan_in))
        w = jax.random.uniform(kw, (fan_in, fan_out), jnp.float32, -bound, bound)
        b = jax.random.uniform(kb, (1, fan_out), jnp.float32, -bound, bound)
        w_p = jnp.zeros((pad_in, pad_out), jnp.float32).at[:fan_in, :fan_out].set(w)
        b_p = jnp.full((1, pad_out), bias_pad_value, jnp.float32).at[:, :fan_out].set(b)
        return w_p, b_p

    w1, b1 = linear(ks[0], ks[1], IN_NODES, H1, IN_NODES, PAD)
    w2, b2 = linear(ks[2], ks[3], H1, H2, PAD, PAD)
    w3, b3 = linear(ks[4], ks[5], H2, OUT_NODES, PAD, PAD, bias_pad_value=NEG_PAD)
    return (w1, b1, w2, b2, w3, b3)


def brain_ref(x, params):
    """Pure-JAX reference (with sigmoid, as in the PyTorch module)."""
    w1, b1, w2, b2, w3, b3 = params
    h1 = jnp.maximum(x @ w1[:IN_NODES, :H1] + b1[:, :H1], 0.0)
    h2 = jnp.maximum(h1 @ w2[:H1, :H2] + b2[:, :H2], 0.0)
    logits = h2 @ w3[:H2, :OUT_NODES] + b3[:, :OUT_NODES]
    probs = jax.nn.sigmoid(logits)
    idx = jnp.argmax(probs, axis=-1)
    return jax.nn.one_hot(idx, OUT_NODES, dtype=jnp.float32)


if __name__ == "__main__":
    key = jax.random.PRNGKey(0)
    k_params, k_x = jax.random.split(key)

    params = init_brain_params(k_params)

    # Batched evaluation: one call scores 256 snakes' 48-feature inputs at once
    # (amortizes launch/DMA overhead; 2 grid tiles -> both TCs on v7x).
    B = 256
    x = jax.random.uniform(k_x, (B, IN_NODES), jnp.float32)

    out = brain_forward(x, params)
    out = jax.block_until_ready(out)

    # Sanity: output is one-hot per row and matches the (sigmoid) reference.
    assert out.shape == (B, OUT_NODES)
    assert bool(jnp.all(jnp.sum(out, axis=-1) == 1.0))
    assert bool(jnp.all((out == 0.0) | (out == 1.0)))
    ref = brain_ref(x, params)
    match = float(jnp.mean(jnp.all(out == ref, axis=-1)))
    assert match > 0.99, f"argmax mismatch rate too high: {1.0 - match}"

    print("KERNEL_OK")
</pallas_src>

<mosaic_0001>
module attributes {stable_mosaic.version = 11 : i64} {
  func.func @brain_kernel(%arg0: i32, %arg1: memref<128x48xf32, #tpu.memory_space<vmem>>, %arg2: memref<48x128xf32, #tpu.memory_space<vmem>>, %arg3: memref<1x128xf32, #tpu.memory_space<vmem>>, %arg4: memref<128x128xf32, #tpu.memory_space<vmem>>, %arg5: memref<1x128xf32, #tpu.memory_space<vmem>>, %arg6: memref<128x128xf32, #tpu.memory_space<vmem>>, %arg7: memref<1x128xf32, #tpu.memory_space<vmem>>, %arg8: memref<128x128xf32, #tpu.memory_space<vmem>>) attributes {dimension_semantics = [#tpu.dimension_semantics<parallel>], iteration_bounds = array<i64: 2>, scalar_prefetch = 0 : i64, scratch_operands = 0 : i64, tpu.core_type = #tpu.core_type<tc>, window_params = [{transform_indices = @transform_0, window_bounds = array<i64: 128, 48>}, {pipeline_mode = #tpu.pipeline_mode<synchronous>, transform_indices = @transform_1, window_bounds = array<i64: 48, 128>}, {pipeline_mode = #tpu.pipeline_mode<synchronous>, transform_indices = @transform_2, window_bounds = array<i64: 1, 128>}, {pipeline_mode = #tpu.pipeline_mode<synchronous>, transform_indices = @transform_3, window_bounds = array<i64: 128, 128>}, {pipeline_mode = #tpu.pipeline_mode<synchronous>, transform_indices = @transform_4, window_bounds = array<i64: 1, 128>}, {pipeline_mode = #tpu.pipeline_mode<synchronous>, transform_indices = @transform_5, window_bounds = array<i64: 128, 128>}, {pipeline_mode = #tpu.pipeline_mode<synchronous>, transform_indices = @transform_6, window_bounds = array<i64: 1, 128>}, {transform_indices = @transform_7, window_bounds = array<i64: 128, 128>}]} {
    %c0 = arith.constant 0 : index
    %c0_0 = arith.constant 0 : index
    %0 = vector.load %arg1[%c0, %c0_0] : memref<128x48xf32, #tpu.memory_space<vmem>>, vector<128x48xf32>
    %c0_1 = arith.constant 0 : index
    %c0_2 = arith.constant 0 : index
    %1 = vector.load %arg2[%c0_1, %c0_2] : memref<48x128xf32, #tpu.memory_space<vmem>>, vector<48x128xf32>
    %cst = arith.constant dense<0.000000e+00> : vector<128x128xf32>
    %2 = tpu.matmul %0, %1, %cst {dimension_numbers = #tpu.dot_dimension_numbers<[1], [0], [0], [1], [0, 0, 1, 1], [], []>} : vector<128x48xf32>, vector<48x128xf32>, vector<128x128xf32> -> vector<128x128xf32>
    %c0_3 = arith.constant 0 : index
    %c0_4 = arith.constant 0 : index
    %3 = vector.load %arg3[%c0_3, %c0_4] : memref<1x128xf32, #tpu.memory_space<vmem>>, vector<1x128xf32>
    %4 = vector.broadcast %3 : vector<1x128xf32> to vector<128x128xf32>
    %5 = arith.addf %2, %4 : vector<128x128xf32>
    %cst_5 = arith.constant 0.000000e+00 : f32
    %6 = vector.broadcast %cst_5 : f32 to vector<128x128xf32>
    %7 = arith.maximumf %5, %6 : vector<128x128xf32>
    %c0_6 = arith.constant 0 : index
    %c0_7 = arith.constant 0 : index
    %8 = vector.load %arg4[%c0_6, %c0_7] : memref<128x128xf32, #tpu.memory_space<vmem>>, vector<128x128xf32>
    %cst_8 = arith.constant dense<0.000000e+00> : vector<128x128xf32>
    %9 = tpu.matmul %7, %8, %cst_8 {dimension_numbers = #tpu.dot_dimension_numbers<[1], [0], [0], [1], [0, 0, 1, 1], [], []>} : vector<128x128xf32>, vector<128x128xf32>, vector<128x128xf32> -> vector<128x128xf32>
    %c0_9 = arith.constant 0 : index
    %c0_10 = arith.constant 0 : index
    %10 = vector.load %arg5[%c0_9, %c0_10] : memref<1x128xf32, #tpu.memory_space<vmem>>, vector<1x128xf32>
    %11 = vector.broadcast %10 : vector<1x128xf32> to vector<128x128xf32>
    %12 = arith.addf %9, %11 : vector<128x128xf32>
    %cst_11 = arith.constant 0.000000e+00 : f32
    %13 = vector.broadcast %cst_11 : f32 to vector<128x128xf32>
    %14 = arith.maximumf %12, %13 : vector<128x128xf32>
    %c0_12 = arith.constant 0 : index
    %c0_13 = arith.constant 0 : index
    %15 = vector.load %arg6[%c0_12, %c0_13] : memref<128x128xf32, #tpu.memory_space<vmem>>, vector<128x128xf32>
    %cst_14 = arith.constant dense<0.000000e+00> : vector<128x128xf32>
    %16 = tpu.matmul %14, %15, %cst_14 {dimension_numbers = #tpu.dot_dimension_numbers<[1], [0], [0], [1], [0, 0, 1, 1], [], []>} : vector<128x128xf32>, vector<128x128xf32>, vector<128x128xf32> -> vector<128x128xf32>
    %c0_15 = arith.constant 0 : index
    %c0_16 = arith.constant 0 : index
    %17 = vector.load %arg7[%c0_15, %c0_16] : memref<1x128xf32, #tpu.memory_space<vmem>>, vector<1x128xf32>
    %18 = vector.broadcast %17 : vector<1x128xf32> to vector<128x128xf32>
    %19 = arith.addf %16, %18 : vector<128x128xf32>
    %20 = tpu.iota {dimensions = array<i32: 1>} : vector<128x128xi32>
    %cst_17 = arith.constant dense<0xFF800000> : vector<128xf32>
    %21 = vector.multi_reduction <maximumf>, %19, %cst_17 [1] : vector<128x128xf32> to vector<128xf32>
    %22 = vector.shape_cast %21 : vector<128xf32> to vector<128x1xf32>
    %23 = vector.broadcast %22 : vector<128x1xf32> to vector<128x128xf32>
    %24 = arith.cmpf oeq, %19, %23 : vector<128x128xf32>
    %c128_i32 = arith.constant 128 : i32
    %25 = vector.broadcast %c128_i32 : i32 to vector<128x128xi32>
    %26 = arith.select %24, %20, %25 : vector<128x128xi1>, vector<128x128xi32>
    %cst_18 = arith.constant dense<2147483647> : vector<128xi32>
    %27 = vector.multi_reduction <minsi>, %26, %cst_18 [1] : vector<128x128xi32> to vector<128xi32>
    %28 = vector.shape_cast %27 : vector<128xi32> to vector<128x1xi32>
    %29 = vector.broadcast %28 : vector<128x1xi32> to vector<128x128xi32>
    %30 = arith.cmpi eq, %20, %29 : vector<128x128xi32>
    %31 = arith.extui %30 : vector<128x128xi1> to vector<128x128xi32>
    %32 = arith.sitofp %31 : vector<128x128xi32> to vector<128x128xf32>
    %c0_19 = arith.constant 0 : index
    %c0_20 = arith.constant 0 : index
    %33 = vector.load %arg8[%c0_19, %c0_20] : memref<128x128xf32, #tpu.memory_space<vmem>>, vector<128x128xf32>
    tpu.vector_store %arg8[%c0_19, %c0_20], %32 {strides = array<i32>} : memref<128x128xf32, #tpu.memory_space<vmem>>, vector<128x128xf32>,
    return
  }
  func.func @transform_0(%arg0: i32) -> (i32, i32) {
    %c0_i32 = arith.constant 0 : i32
    %c0_i32_0 = arith.constant 0 : i32
    return %arg0, %c0_i32 : i32, i32
  }
  func.func @transform_1(%arg0: i32) -> (i32, i32) {
    %c0_i32 = arith.constant 0 : i32
    %c0_i32_0 = arith.constant 0 : i32
    %c0_i32_1 = arith.constant 0 : i32
    return %c0_i32, %c0_i32_0 : i32, i32
  }
  func.func @transform_2(%arg0: i32) -> (i32, i32) {
    %c0_i32 = arith.constant 0 : i32
    %c0_i32_0 = arith.constant 0 : i32
    %c0_i32_1 = arith.constant 0 : i32
    return %c0_i32, %c0_i32_0 : i32, i32
  }
  func.func @transform_3(%arg0: i32) -> (i32, i32) {
    %c0_i32 = arith.constant 0 : i32
    %c0_i32_0 = arith.constant 0 : i32
    %c0_i32_1 = arith.constant 0 : i32
    return %c0_i32, %c0_i32_0 : i32, i32
  }
  func.func @transform_4(%arg0: i32) -> (i32, i32) {
    %c0_i32 = arith.constant 0 : i32
    %c0_i32_0 = arith.constant 0 : i32
    %c0_i32_1 = arith.constant 0 : i32
    return %c0_i32, %c0_i32_0 : i32, i32
  }
  func.func @transform_5(%arg0: i32) -> (i32, i32) {
    %c0_i32 = arith.constant 0 : i32
    %c0_i32_0 = arith.constant 0 : i32
    %c0_i32_1 = arith.constant 0 : i32
    return %c0_i32, %c0_i32_0 : i32, i32
  }
  func.func @transform_6(%arg0: i32) -> (i32, i32) {
    %c0_i32 = arith.constant 0 : i32
    %c0_i32_0 = arith.constant 0 : i32
    %c0_i32_1 = arith.constant 0 : i32
    return %c0_i32, %c0_i32_0 : i32, i32
  }
  func.func @transform_7(%arg0: i32) -> (i32, i32) {
    %c0_i32 = arith.constant 0 : i32
    %c0_i32_0 = arith.constant 0 : i32
    return %arg0, %c0_i32 : i32, i32
  }
}

</mosaic_0001>

<llo_original>
// kernel: brain_forward.1
$region0: #{brain_forward.1}
  #allocation0 [shape = 'u32[]', space=smem, size = 0x4, offset = 0x4, fixed_abs, tag = 'smem constant byte address 0x4 - core index']
  #allocation1 [shape = 'u32[144,128]{1,0:T(1,128)}', space=vmem, size = 0x12000, scoped, tag = 'internal scratch']
  %s0 = inlined_call_operand.vmem [shape: f32[256,48], index: 0, kind: input, shape index: {}]
  %s1 = inlined_call_operand.vmem [shape: f32[48,128], index: 1, kind: input, shape index: {}]
  %s2 = inlined_call_operand.vmem [shape: f32[1,128], index: 2, kind: input, shape index: {}]
  %s3 = inlined_call_operand.vmem [shape: f32[128,128], index: 3, kind: input, shape index: {}]
  %s4 = inlined_call_operand.vmem [shape: f32[1,128], index: 4, kind: input, shape index: {}]
  %s5 = inlined_call_operand.vmem [shape: f32[128,128], index: 5, kind: input, shape index: {}]
  %s6 = inlined_call_operand.vmem [shape: f32[1,128], index: 6, kind: input, shape index: {}]
  %s7 = inlined_call_operand.vmem [shape: f32[256,128], index: 7, kind: output, shape index: {}]
  %s8 = sld [smem:[#allocation0]]
  $region61: #{brain_forward.1} parent=0
    _
  %s10 = ssub.s32 1, %s8
  %s11 = scalar_select 0, %s10, %s8
  loop: start=0, step=1, limit=4
  $region2: #{brain_forward.1} parent=0 // loop_pre_header
    _
  $region3: #{brain_forward.1} parent=0 // loop_header
    %s13 = sphi 0, %s17
    %p14 = scmp.ge.s32.totalorder %s13, 4
    %s23 = sphi 0, %s25
    %s26 = sphi 0, %s23
    %s27 = sphi 0, %s26
    %s43 = sphi 0, %s27
    %s47 = sphi 0, %s47
    %s49 = sphi 0, %s47
    %s50 = sphi 0, %s49
    %s64 = sphi 0, %s50
    %s68 = sphi 0, %s68
    %s70 = sphi 0, %s68
    %s71 = sphi 0, %s70
    %s85 = sphi 0, %s71
    %s89 = sphi 0, %s89
    %s91 = sphi 0, %s89
    %s92 = sphi 0, %s91
    %s106 = sphi 0, %s92
    %s110 = sphi 0, %s110
    %s112 = sphi 0, %s110
    %s113 = sphi 0, %s112
    %s127 = sphi 0, %s113
    %s131 = sphi 0, %s131
    %s133 = sphi 0, %s131
    %s134 = sphi 0, %s133
    %s148 = sphi 0, %s134
    %s152 = sphi 0, %s152
    %s154 = sphi 0, %s152
    %s155 = sphi 0, %s154
    %s169 = sphi 0, %s155
    %s175 = sphi 0, %s177
    %s178 = sphi 0, %s175
    %s179 = sphi 0, %s178
    %s195 = sphi 0, %s179
  $region4: #{brain_forward.1} parent=0 // loop_header_branch
    %16 = sbr.rel (%p14) target = $region8
  $region5: #{brain_forward.1} parent=0 // loop_body
    %s18 = ssub.s32 %s13, 1
    %s19 = ssub.s32 %s13, 2
    %s20 = sadd.s32 %s13, 1
    %s21 = ssub.s32 %s13, %s20
    %p22 = scmp.eq.s32.totalorder %s21, 0
    %s24 = sadd.s32 %s23, 1
    %s25 = scalar_select %p22, %s23, %s24
    %p28 = pneg %p22
    %p29 = scmp.eq.s32.totalorder %s13, 1
    %p30 = por %p28, %p29
    %p31 = scmp.ne.s32.totalorder %s23, %s26
    %p32 = scmp.eq.s32.totalorder %s13, 0
    %p33 = por %p31, %p32
    %p34 = scmp.ne.s32.totalorder %s23, %s26
    %p35 = scmp.eq.s32.totalorder %s18, 1
    %p36 = por %p34, %p35
    %p37 = scmp.ne.s32.totalorder %s26, %s27
    %p38 = scmp.eq.s32.totalorder %s18, 0
    %p39 = por %p37, %p38
    %p40 = scmp.ne.s32.totalorder %s26, %s27
    %p41 = scmp.eq.s32.totalorder %s19, 1
    %p42 = por %p40, %p41
    %p44 = scmp.ne.s32.totalorder %s27, %s43
    %p45 = scmp.eq.s32.totalorder %s19, 0
    %p46 = por %p44, %p45
    %s48 = sadd.s32 %s47, 1
    %p51 = scmp.eq.s32.totalorder %s13, 1
    %p52 = scmp.ne.s32.totalorder %s47, %s49
    %p53 = scmp.eq.s32.totalorder %s13, 0
    %p54 = por %p52, %p53
    %p55 = scmp.ne.s32.totalorder %s47, %s49
    %p56 = scmp.eq.s32.totalorder %s18, 1
    %p57 = por %p55, %p56
    %p58 = scmp.ne.s32.totalorder %s49, %s50
    %p59 = scmp.eq.s32.totalorder %s18, 0
    %p60 = por %p58, %p59
    %p61 = scmp.ne.s32.totalorder %s49, %s50
    %p62 = scmp.eq.s32.totalorder %s19, 1
    %p63 = por %p61, %p62
    %p65 = scmp.ne.s32.totalorder %s50, %s64
    %p66 = scmp.eq.s32.totalorder %s19, 0
    %p67 = por %p65, %p66
    %s69 = sadd.s32 %s68, 1
    %p72 = scmp.eq.s32.totalorder %s13, 1
    %p73 = scmp.ne.s32.totalorder %s68, %s70
    %p74 = scmp.eq.s32.totalorder %s13, 0
    %p75 = por %p73, %p74
    %p76 = scmp.ne.s32.totalorder %s68, %s70
    %p77 = scmp.eq.s32.totalorder %s18, 1
    %p78 = por %p76, %p77
    %p79 = scmp.ne.s32.totalorder %s70, %s71
    %p80 = scmp.eq.s32.totalorder %s18, 0
    %p81 = por %p79, %p80
    %p82 = scmp.ne.s32.totalorder %s70, %s71
    %p83 = scmp.eq.s32.totalorder %s19, 1
    %p84 = por %p82, %p83
    %p86 = scmp.ne.s32.totalorder %s71, %s85
    %p87 = scmp.eq.s32.totalorder %s19, 0
    %p88 = por %p86, %p87
    %s90 = sadd.s32 %s89, 1
    %p93 = scmp.eq.s32.totalorder %s13, 1
    %p94 = scmp.ne.s32.totalorder %s89, %s91
    %p95 = scmp.eq.s32.totalorder %s13, 0
    %p96 = por %p94, %p95
    %p97 = scmp.ne.s32.totalorder %s89, %s91
    %p98 = scmp.eq.s32.totalorder %s18, 1
    %p99 = por %p97, %p98
    %p100 = scmp.ne.s32.totalorder %s91, %s92
    %p101 = scmp.eq.s32.totalorder %s18, 0
    %p102 = por %p100, %p101
    %p103 = scmp.ne.s32.totalorder %s91, %s92
    %p104 = scmp.eq.s32.totalorder %s19, 1
    %p105 = por %p103, %p104
    %p107 = scmp.ne.s32.totalorder %s92, %s106
    %p108 = scmp.eq.s32.totalorder %s19, 0
    %p109 = por %p107, %p108
    %s111 = sadd.s32 %s110, 1
    %p114 = scmp.eq.s32.totalorder %s13, 1
    %p115 = scmp.ne.s32.totalorder %s110, %s112
    %p116 = scmp.eq.s32.totalorder %s13, 0
    %p117 = por %p115, %p116
    %p118 = scmp.ne.s32.totalorder %s110, %s112
    %p119 = scmp.eq.s32.totalorder %s18, 1
    %p120 = por %p118, %p119
    %p121 = scmp.ne.s32.totalorder %s112, %s113
    %p122 = scmp.eq.s32.totalorder %s18, 0
    %p123 = por %p121, %p122
    %p124 = scmp.ne.s32.totalorder %s112, %s113
    %p125 = scmp.eq.s32.totalorder %s19, 1
    %p126 = por %p124, %p125
    %p128 = scmp.ne.s32.totalorder %s113, %s127
    %p129 = scmp.eq.s32.totalorder %s19, 0
    %p130 = por %p128, %p129
    %s132 = sadd.s32 %s131, 1
    %p135 = scmp.eq.s32.totalorder %s13, 1
    %p136 = scmp.ne.s32.totalorder %s131, %s133
    %p137 = scmp.eq.s32.totalorder %s13, 0
    %p138 = por %p136, %p137
    %p139 = scmp.ne.s32.totalorder %s131, %s133
    %p140 = scmp.eq.s32.totalorder %s18, 1
    %p141 = por %p139, %p140
    %p142 = scmp.ne.s32.totalorder %s133, %s134
    %p143 = scmp.eq.s32.totalorder %s18, 0
    %p144 = por %p142, %p143
    %p145 = scmp.ne.s32.totalorder %s133, %s134
    %p146 = scmp.eq.s32.totalorder %s19, 1
    %p147 = por %p145, %p146
    %p149 = scmp.ne.s32.totalorder %s134, %s148
    %p150 = scmp.eq.s32.totalorder %s19, 0
    %p151 = por %p149, %p150
    %s153 = sadd.s32 %s152, 1
    %p156 = scmp.eq.s32.totalorder %s13, 1
    %p157 = scmp.ne.s32.totalorder %s152, %s154
    %p158 = scmp.eq.s32.totalorder %s13, 0
    %p159 = por %p157, %p158
    %p160 = scmp.ne.s32.totalorder %s152, %s154
    %p161 = scmp.eq.s32.totalorder %s18, 1
    %p162 = por %p160, %p161
    %p163 = scmp.ne.s32.totalorder %s154, %s155
    %p164 = scmp.eq.s32.totalorder %s18, 0
    %p165 = por %p163, %p164
    %p166 = scmp.ne.s32.totalorder %s154, %s155
    %p167 = scmp.eq.s32.totalorder %s19, 1
    %p168 = por %p166, %p167
    %p170 = scmp.ne.s32.totalorder %s155, %s169
    %p171 = scmp.eq.s32.totalorder %s19, 0
    %p172 = por %p170, %p171
    %s173 = ssub.s32 %s13, %s20
    %p174 = scmp.eq.s32.totalorder %s173, 0
    %s176 = sadd.s32 %s175, 1
    %s177 = scalar_select %p174, %s175, %s176
    %p180 = pneg %p174
    %p181 = scmp.eq.s32.totalorder %s13, 1
    %p182 = por %p180, %p181
    %p183 = scmp.ne.s32.totalorder %s175, %s178
    %p184 = scmp.eq.s32.totalorder %s13, 0
    %p185 = por %p183, %p184
    %p186 = scmp.ne.s32.totalorder %s175, %s178
    %p187 = scmp.eq.s32.totalorder %s18, 1
    %p188 = por %p186, %p187
    %p189 = scmp.ne.s32.totalorder %s178, %s179
    %p190 = scmp.eq.s32.totalorder %s18, 0
    %p191 = por %p189, %p190
    %p192 = scmp.ne.s32.totalorder %s178, %s179
    %p193 = scmp.eq.s32.totalorder %s19, 1
    %p194 = por %p192, %p193
    %p196 = scmp.ne.s32.totalorder %s179, %s195
    %p197 = scmp.eq.s32.totalorder %s19, 0
    %p198 = por %p196, %p197
    %p199 = scmp.le.s32.totalorder 1, %s13
    %p200 = scmp.lt.s32.totalorder %s13, 3
    %p201 = pnand %p199, %p200
    %p202 = pneg %p201
    // Predicated region
    $region9: #{brain_forward.1} parent=5 // pred_check
      _
    $region10: #{brain_forward.1} parent=5 // pred_check_branch
      %204 = sbr.rel (%p201) target = $region12
    $region11: #{brain_forward.1} parent=5 // pred_region
      %s205 = ssub.s32 %s13, 1
      // Predicated region
      $region13: #{brain_forward.1} parent=11 // pred_check
        %p206 = pneg %p60
      $region14: #{brain_forward.1} parent=11 // pred_check_branch
        %208 = sbr.rel (%p206) target = $region16
      $region15: #{brain_forward.1} parent=11 // pred_region
        _
      $region16: #{brain_forward.1} parent=11 // pred_fallthru
        _
      // Predicated region
      $region17: #{brain_forward.1} parent=11 // pred_check
        %p209 = pneg %p81
      $region18: #{brain_forward.1} parent=11 // pred_check_branch
        %211 = sbr.rel (%p209) target = $region20
      $region19: #{brain_forward.1} parent=11 // pred_region
        _
      $region20: #{brain_forward.1} parent=11 // pred_fallthru
        _
      // Predicated region
      $region21: #{brain_forward.1} parent=11 // pred_check
        %p212 = pneg %p102
      $region22: #{brain_forward.1} parent=11 // pred_check_branch
        %214 = sbr.rel (%p212) target = $region24
      $region23: #{brain_forward.1} parent=11 // pred_region
        _
      $region24: #{brain_forward.1} parent=11 // pred_fallthru
        _
      // Predicated region
      $region25: #{brain_forward.1} parent=11 // pred_check
        %p215 = pneg %p123
      $region26: #{brain_forward.1} parent=11 // pred_check_branch
        %217 = sbr.rel (%p215) target = $region28
      $region27: #{brain_forward.1} parent=11 // pred_region
        _
      $region28: #{brain_forward.1} parent=11 // pred_fallthru
        _
      // Predicated region
      $region29: #{brain_forward.1} parent=11 // pred_check
        %p218 = pneg %p144
      $region30: #{brain_forward.1} parent=11 // pred_check_branch
        %220 = sbr.rel (%p218) target = $region32
      $region31: #{brain_forward.1} parent=11 // pred_region
        _
      $region32: #{brain_forward.1} parent=11 // pred_fallthru
        _
      // Predicated region
      $region33: #{brain_forward.1} parent=11 // pred_check
        %p221 = pneg %p165
      $region34: #{brain_forward.1} parent=11 // pred_check_branch
        %223 = sbr.rel (%p221) target = $region36
      $region35: #{brain_forward.1} parent=11 // pred_region
        _
      $region36: #{brain_forward.1} parent=11 // pred_fallthru
        _
    $region12: #{brain_forward.1} parent=5 // pred_fallthru
      _
    %p224 = scmp.lt.s32.totalorder %s13, 2
    // Predicated region
    $region37: #{brain_forward.1} parent=5 // pred_check
      %p225 = pneg %p224
    $region38: #{brain_forward.1} parent=5 // pred_check_branch
      %227 = sbr.rel (%p225) target = $region40
    $region39: #{brain_forward.1} parent=5 // pred_region
      // Predicated region
      $region41: #{brain_forward.1} parent=39 // pred_check
        %p228 = pneg %p33
      $region42: #{brain_forward.1} parent=39 // pred_check_branch
        %230 = sbr.rel (%p228) target = $region44
      $region43: #{brain_forward.1} parent=39 // pred_region
        %s231 = smul.u32 16, %s13
        %p232 = scmp.lt.s32.totalorder %s231, 31
        %s233 = scalar_select %p232, %s231, 31
        %s234 = smul.addr %s233, 8
        %s235 = scalar_lea.vmem %s0, %s234
        %s236 = smul.u32 16, %s13
      $region44: #{brain_forward.1} parent=39 // pred_fallthru
        _
    $region40: #{brain_forward.1} parent=5 // pred_fallthru
      _
    %p237 = scmp.le.s32.totalorder 1, %s13
    %p238 = scmp.lt.s32.totalorder %s13, 3
    %p239 = pnand %p237, %p238
    %p240 = pneg %p239
    // Predicated region
    $region45: #{brain_forward.1} parent=5 // pred_check
      _
    $region46: #{brain_forward.1} parent=5 // pred_check_branch
      %242 = sbr.rel (%p239) target = $region48
    $region47: #{brain_forward.1} parent=5 // pred_region
      %s243 = ssub.s32 %s13, 1
      %s244 = smul.u32 16, %s18
      %p245 = scmp.lt.s32.totalorder %s244, 31
      %s246 = scalar_select %p245, %s244, 31
      %s247 = smul.addr %s246, 8
      %s248 = scalar_lea.vmem %s0, %s247
      %p249 = pneg %p39
      %p250 = pneg %p36
      %p251 = pneg %p60
      %p252 = pneg %p57
      %p253 = pneg %p81
      %p254 = pneg %p78
      %p255 = pneg %p102
      %p256 = pneg %p99
      %p257 = pneg %p123
      %p258 = pneg %p120
      %p259 = pneg %p144
      %p260 = pneg %p141
      %p261 = pneg %p165
      %p262 = pneg %p162
      %p263 = pneg %p191
      %p264 = pneg %p188
      %s265 = smul.u32 16, %s18
      %p266 = scmp.lt.s32.totalorder %s265, 31
      %s267 = scalar_select %p266, %s265, 31
      %s268 = smul.addr %s267, 8
      %s269 = scalar_lea.vmem %s7, %s268
      %s270 = smul.u32 16, %s18
      %p271 = scmp.lt.s32.totalorder %s270, 31
      %s272 = scalar_select %p271, %s270, 31
      %s273 = smul.addr %s272, 8
      %s274 = scalar_lea.vmem %s0, %s273
      %s275 = smul.u32 16, %s18
      %s276 = smul.u32 16, %s18
      %p277 = scmp.lt.s32.totalorder %s276, 31
      %s278 = scalar_select %p277, %s276, 31
      %s279 = smul.addr %s278, 8
      %s280 = scalar_lea.vmem %s7, %s279
      %s281 = smul.u32 16, %s18
      %v282 = vld [vmem:[%s274] sm:$0xff]
      %v283 = vld [vmem:[%s274 + $0x8] sm:$0xff]
      %v284 = vld [vmem:[%s274 + $0x10] sm:$0xff]
      %v285 = vld [vmem:[%s274 + $0x18] sm:$0xff]
      %v286 = vld [vmem:[%s274 + $0x20] sm:$0xff]
      %v287 = vld [vmem:[%s274 + $0x28] sm:$0xff]
      %v288 = vld [vmem:[%s274 + $0x30] sm:$0xff]
      %v289 = vld [vmem:[%s274 + $0x38] sm:$0xff]
      %v290 = vld [vmem:[%s274 + $0x40] sm:$0xff]
      %v291 = vld [vmem:[%s274 + $0x48] sm:$0xff]
      %v292 = vld [vmem:[%s274 + $0x50] sm:$0xff]
      %v293 = vld [vmem:[%s274 + $0x58] sm:$0xff]
      %v294 = vld [vmem:[%s274 + $0x60] sm:$0xff]
      %v295 = vld [vmem:[%s274 + $0x68] sm:$0xff]
      %v296 = vld [vmem:[%s274 + $0x70] sm:$0xff]
      %v297 = vld [vmem:[%s274 + $0x78] sm:$0xff]
      %v298 = vld [vmem:[%s1] sm:$0xff]
      %v299 = vld [vmem:[%s1 + $0x8] sm:$0xff]
      %v300 = vld [vmem:[%s1 + $0x10] sm:$0xff]
      %v301 = vld [vmem:[%s1 + $0x18] sm:$0xff]
      %v302 = vld [vmem:[%s1 + $0x20] sm:$0xff]
      %v303 = vld [vmem:[%s1 + $0x28] sm:$0xff]
      %v304 = vld [vmem:[%s2] sm:$0x1]
      %v306 = vlaneseq
      %v307 = vshrl.u32 %v306, 7
      %v308 = vsub.s32 0, %v307
      %v309 = vrot.slane %v304, %v308
      %vm311 = vcmask 392192
      %v313 = vsel %vm311, %v282, 0
      %v316 = vsel %vm311, %v283, 0
      %v319 = vsel %vm311, %v284, 0
      %v322 = vsel %vm311, %v285, 0
      %v325 = vsel %vm311, %v286, 0
      %v328 = vsel %vm311, %v287, 0
      %v331 = vsel %vm311, %v288, 0
      %v334 = vsel %vm311, %v289, 0
      %v337 = vsel %vm311, %v290, 0
      %v340 = vsel %vm311, %v291, 0
      %v343 = vsel %vm311, %v292, 0
      %v346 = vsel %vm311, %v293, 0
      %v349 = vsel %vm311, %v294, 0
      %v352 = vsel %vm311, %v295, 0
      %v355 = vsel %vm311, %v296, 0
      %v358 = vsel %vm311, %v297, 0
      %360 = vmatprep.subr.mxu0 0.0
      %361 = vmatpush1.msra.mxu0 %v298
      %362 = vmatprep.subr.mxu0 0.0
      %363 = vmatpush1.msra.mxu0 %v299
      %364 = vmatprep.subr.mxu0 0.0
      %365 = vmatpush1.msra.mxu0 %v300
      %366 = vmatprep.subr.mxu0 0.0
      %367 = vmatpush1.msra.mxu0 %v301
      %368 = vmatprep.subr.mxu0 0.0
      %369 = vmatpush1.msra.mxu0 %v302
      %370 = vmatprep.subr.mxu0 0.0
      %371 = vmatpush1.msra.mxu0 %v303
      %372 = vmatprep.subr.mxu0 0.0
      %373 = vmatpush1.msra.mxu0 0.0
      %374 = vmatprep.subr.mxu0 0.0
      %375 = vmatpush1.msra.mxu0 0.0
      %376 = vmatprep.subr.mxu0 0.0
      %377 = vmatpush1.msra.mxu0 0.0
      %378 = vmatprep.subr.mxu0 0.0
      %379 = vmatpush1.msra.mxu0 0.0
      %380 = vmatprep.subr.mxu0 0.0
      %381 = vmatpush1.msra.mxu0 0.0
      %382 = vmatprep.subr.mxu0 0.0
      %383 = vmatpush1.msra.mxu0 0.0
      %384 = vmatprep.subr.mxu0 0.0
      %385 = vmatpush1.msra.mxu0 0.0
      %386 = vmatprep.subr.mxu0 0.0
      %387 = vmatpush1.msra.mxu0 0.0
      %388 = vmatprep.subr.mxu0 0.0
      %389 = vmatpush1.msra.mxu0 0.0
      %390 = vmatprep.subr.mxu0 0.0
      %391 = vmatpush1.msra.mxu0 0.0
      %392 = vmatprep.subr.mxu0 0.0
      %393 = vmatpush1.msra.mxu0 0.0
      %394 = vmatprep.subr.mxu0 0.0
      %395 = vmatpush1.msra.mxu0 0.0
      %396 = vmatprep.subr.mxu0 0.0
      %397 = vmatpush1.msra.mxu0 0.0
      %398 = vmatprep.subr.mxu0 0.0
      %399 = vmatpush1.msra.mxu0 0.0
      %400 = vmatprep.subr.mxu0 0.0
      %401 = vmatpush1.msra.mxu0 0.0
      %402 = vmatprep.subr.mxu0 0.0
      %403 = vmatpush1.msra.mxu0 0.0
      %404 = vmatprep.subr.mxu0 0.0
      %405 = vmatpush1.msra.mxu0 0.0
      %406 = vmatprep.subr.mxu0 0.0
      %407 = vmatpush1.msra.mxu0 0.0
      %408 = vmatprep.subr.mxu0 0.0
      %409 = vmatpush1.msra.mxu0 0.0
      %410 = vmatprep.subr.mxu0 0.0
      %411 = vmatpush1.msra.mxu0 0.0
      %412 = vmatprep.subr.mxu0 0.0
      %413 = vmatpush1.msra.mxu0 0.0
      %414 = vmatprep.subr.mxu0 0.0
      %415 = vmatpush1.msra.mxu0 0.0
      %416 = vmatprep.subr.mxu0 0.0
      %417 = vmatpush1.msra.mxu0 0.0
      %418 = vmatprep.subr.mxu0 0.0
      %419 = vmatpush1.msra.mxu0 0.0
      %420 = vmatprep.subr.mxu0 0.0
      %421 = vmatpush1.msra.mxu0 0.0
      %422 = vmatprep.subr.mxu0 0.0
      %423 = vmatpush1.msra.mxu0 0.0
      %424 = vmatprep.mubr.f32.mxu0 0.0
      %425 = vmatmul.mubr.f32.gmra.mrb[0].mxu0 %v313
      %v426 = vpop.f32.mrb[0].mxu0
      %v427 = vadd.f32 %v309, %v426
      %v428 = vpop.f32.mrb[0].mxu0
      %429 = vmatprep.mubr.f32.mxu0 0.0
      %430 = vmatmul.mubr.f32.gmra.mrb[0].mxu0 %v316
      %v431 = vpop.f32.mrb[0].mxu0
      %v432 = vadd.f32 %v309, %v431
      %v433 = vpop.f32.mrb[0].mxu0
      %434 = vmatprep.mubr.f32.mxu0 0.0
      %435 = vmatmul.mubr.f32.gmra.mrb[0].mxu0 %v319
      %v436 = vpop.f32.mrb[0].mxu0
      %v437 = vadd.f32 %v309, %v436
      %v438 = vpop.f32.mrb[0].mxu0
      %439 = vmatprep.mubr.f32.mxu0 0.0
      %440 = vmatmul.mubr.f32.gmra.mrb[0].mxu0 %v322
      %v441 = vpop.f32.mrb[0].mxu0
      %v442 = vadd.f32 %v309, %v441
      %v443 = vpop.f32.mrb[0].mxu0
      %444 = vmatprep.mubr.f32.mxu0 0.0
      %445 = vmatmul.mubr.f32.gmra.mrb[0].mxu0 %v325
      %v446 = vpop.f32.mrb[0].mxu0
      %v447 = vadd.f32 %v309, %v446
      %v448 = vpop.f32.mrb[0].mxu0
      %449 = vmatprep.mubr.f32.mxu0 0.0
      %450 = vmatmul.mubr.f32.gmra.mrb[0].mxu0 %v328
      %v451 = vpop.f32.mrb[0].mxu0
      %v452 = vadd.f32 %v309, %v451
      %v453 = vpop.f32.mrb[0].mxu0
      %454 = vmatprep.mubr.f32.mxu0 0.0
      %455 = vmatmul.mubr.f32.gmra.mrb[0].mxu0 %v331
      %v456 = vpop.f32.mrb[0].mxu0
      %v457 = vadd.f32 %v309, %v456
      %v458 = vpop.f32.mrb[0].mxu0
      %459 = vmatprep.mubr.f32.mxu0 0.0
      %460 = vmatmul.mubr.f32.gmra.mrb[0].mxu0 %v334
      %v461 = vpop.f32.mrb[0].mxu0
      %v462 = vadd.f32 %v309, %v461
      %v463 = vpop.f32.mrb[0].mxu0
      %464 = vmatprep.mubr.f32.mxu0 0.0
      %465 = vmatmul.mubr.f32.gmra.mrb[0].mxu0 %v337
      %v466 = vpop.f32.mrb[0].mxu0
      %v467 = vadd.f32 %v309, %v466
      %v468 = vpop.f32.mrb[0].mxu0
      %469 = vmatprep.mubr.f32.mxu0 0.0
      %470 = vmatmul.mubr.f32.gmra.mrb[0].mxu0 %v340
      %v471 = vpop.f32.mrb[0].mxu0
      %v472 = vadd.f32 %v309, %v471
      %v473 = vpop.f32.mrb[0].mxu0
      %474 = vmatprep.mubr.f32.mxu0 0.0
      %475 = vmatmul.mubr.f32.gmra.mrb[0].mxu0 %v343
      %v476 = vpop.f32.mrb[0].mxu0
      %v477 = vadd.f32 %v309, %v476
      %v478 = vpop.f32.mrb[0].mxu0
      %479 = vmatprep.mubr.f32.mxu0 0.0
      %480 = vmatmul.mubr.f32.gmra.mrb[0].mxu0 %v346
      %v481 = vpop.f32.mrb[0].mxu0
      %v482 = vadd.f32 %v309, %v481
      %v483 = vpop.f32.mrb[0].mxu0
      %484 = vmatprep.mubr.f32.mxu0 0.0
      %485 = vmatmul.mubr.f32.gmra.mrb[0].mxu0 %v349
      %v486 = vpop.f32.mrb[0].mxu0
      %v487 = vadd.f32 %v309, %v486
      %v488 = vpop.f32.mrb[0].mxu0
      %489 = vmatprep.mubr.f32.mxu0 0.0
      %490 = vmatmul.mubr.f32.gmra.mrb[0].mxu0 %v352
      %v491 = vpop.f32.mrb[0].mxu0
      %v492 = vadd.f32 %v309, %v491
      %v493 = vpop.f32.mrb[0].mxu0
      %494 = vmatprep.mubr.f32.mxu0 0.0
      %495 = vmatmul.mubr.f32.gmra.mrb[0].mxu0 %v355
      %v496 = vpop.f32.mrb[0].mxu0
      %v497 = vadd.f32 %v309, %v496
      %v498 = vpop.f32.mrb[0].mxu0
      %499 = vmatprep.mubr.f32.mxu0 0.0
      %500 = vmatmul.mubr.f32.gmra.mrb[0].mxu0 %v358
      %v501 = vpop.f32.mrb[0].mxu0
      %v502 = vadd.f32 %v309, %v501
      %v503 = vpop.f32.mrb[0].mxu0
      %504 = vdwg.mxu0
      %v505 = vmax.f32 %v427, 0.0
      %v506 = vmax.f32 %v432, 0.0
      %v507 = vmax.f32 %v437, 0.0
      %v508 = vmax.f32 %v442, 0.0
      %v509 = vmax.f32 %v447, 0.0
      %v510 = vmax.f32 %v452, 0.0
      %v511 = vmax.f32 %v457, 0.0
      %v512 = vmax.f32 %v462, 0.0
      %v513 = vmax.f32 %v467, 0.0
      %v514 = vmax.f32 %v472, 0.0
      %v515 = vmax.f32 %v477, 0.0
      %v516 = vmax.f32 %v482, 0.0
      %v517 = vmax.f32 %v487, 0.0
      %v518 = vmax.f32 %v492, 0.0
      %v519 = vmax.f32 %v497, 0.0
      %v520 = vmax.f32 %v502, 0.0
      %v521 = vld [vmem:[%s3] sm:$0xff]
      %v522 = vld [vmem:[%s3 + $0x8] sm:$0xff]
      %v523 = vld [vmem:[%s3 + $0x10] sm:$0xff]
      %v524 = vld [vmem:[%s3 + $0x18] sm:$0xff]
      %v525 = vld [vmem:[%s3 + $0x20] sm:$0xff]
      %v526 = vld [vmem:[%s3 + $0x28] sm:$0xff]
      %v527 = vld [vmem:[%s3 + $0x30] sm:$0xff]
      %v528 = vld [vmem:[%s3 + $0x38] sm:$0xff]
      %v529 = vld [vmem:[%s3 + $0x40] sm:$0xff]
      %v530 = vld [vmem:[%s3 + $0x48] sm:$0xff]
      %v531 = vld [vmem:[%s3 + $0x50] sm:$0xff]
      %v532 = vld [vmem:[%s3 + $0x58] sm:$0xff]
      %v533 = vld [vmem:[%s3 + $0x60] sm:$0xff]
      %v534 = vld [vmem:[%s3 + $0x68] sm:$0xff]
      %v535 = vld [vmem:[%s3 + $0x70] sm:$0xff]
      %v536 = vld [vmem:[%s3 + $0x78] sm:$0xff]
      %v537 = vld [vmem:[%s4] sm:$0x1]
      %v539 = vlaneseq
      %v540 = vshrl.u32 %v539, 7
      %v541 = vsub.s32 0, %v540
      %v542 = vrot.slane %v537, %v541
      %544 = vmatprep.subr.mxu0 0.0
      %545 = vmatpush1.msra.mxu0 %v521
      %546 = vmatprep.subr.mxu0 0.0
      %547 = vmatpush1.msra.mxu0 %v522
      %548 = vmatprep.subr.mxu0 0.0
      %549 = vmatpush1.msra.mxu0 %v523
      %550 = vmatprep.subr.mxu0 0.0
      %551 = vmatpush1.msra.mxu0 %v524
      %552 = vmatprep.subr.mxu0 0.0
      %553 = vmatpush1.msra.mxu0 %v525
      %554 = vmatprep.subr.mxu0 0.0
      %555 = vmatpush1.msra.mxu0 %v526
      %556 = vmatprep.subr.mxu0 0.0
      %557 = vmatpush1.msra.mxu0 %v527
      %558 = vmatprep.subr.mxu0 0.0
      %559 = vmatpush1.msra.mxu0 %v528
      %560 = vmatprep.subr.mxu0 0.0
      %561 = vmatpush1.msra.mxu0 %v529
      %562 = vmatprep.subr.mxu0 0.0
      %563 = vmatpush1.msra.mxu0 %v530
      %564 = vmatprep.subr.mxu0 0.0
      %565 = vmatpush1.msra.mxu0 %v531
      %566 = vmatprep.subr.mxu0 0.0
      %567 = vmatpush1.msra.mxu0 %v532
      %568 = vmatprep.subr.mxu0 0.0
      %569 = vmatpush1.msra.mxu0 %v533
      %570 = vmatprep.subr.mxu0 0.0
      %571 = vmatpush1.msra.mxu0 %v534
      %572 = vmatprep.subr.mxu0 0.0
      %573 = vmatpush1.msra.mxu0 %v535
      %574 = vmatprep.subr.mxu0 0.0
      %575 = vmatpush1.msra.mxu0 %v536
      %576 = vmatprep.subr.mxu0 0.0
      %577 = vmatpush1.msra.mxu0 0.0
      %578 = vmatprep.subr.mxu0 0.0
      %579 = vmatpush1.msra.mxu0 0.0
      %580 = vmatprep.subr.mxu0 0.0
      %581 = vmatpush1.msra.mxu0 0.0
      %582 = vmatprep.subr.mxu0 0.0
      %583 = vmatpush1.msra.mxu0 0.0
      %584 = vmatprep.subr.mxu0 0.0
      %585 = vmatpush1.msra.mxu0 0.0
      %586 = vmatprep.subr.mxu0 0.0
      %587 = vmatpush1.msra.mxu0 0.0
      %588 = vmatprep.subr.mxu0 0.0
      %589 = vmatpush1.msra.mxu0 0.0
      %590 = vmatprep.subr.mxu0 0.0
      %591 = vmatpush1.msra.mxu0 0.0
      %592 = vmatprep.subr.mxu0 0.0
      %593 = vmatpush1.msra.mxu0 0.0
      %594 = vmatprep.subr.mxu0 0.0
      %595 = vmatpush1.msra.mxu0 0.0
      %596 = vmatprep.subr.mxu0 0.0
      %597 = vmatpush1.msra.mxu0 0.0
      %598 = vmatprep.subr.mxu0 0.0
      %599 = vmatpush1.msra.mxu0 0.0
      %600 = vmatprep.subr.mxu0 0.0
      %601 = vmatpush1.msra.mxu0 0.0
      %602 = vmatprep.subr.mxu0 0.0
      %603 = vmatpush1.msra.mxu0 0.0
      %604 = vmatprep.subr.mxu0 0.0
      %605 = vmatpush1.msra.mxu0 0.0
      %606 = vmatprep.subr.mxu0 0.0
      %607 = vmatpush1.msra.mxu0 0.0
      %608 = vmatprep.mubr.f32.mxu0 0.0
      %609 = vmatmul.mubr.f32.gmra.mrb[0].mxu0 %v505
      %v610 = vpop.f32.mrb[0].mxu0
      %v611 = vadd.f32 %v542, %v610
      %v612 = vpop.f32.mrb[0].mxu0
      %613 = vmatprep.mubr.f32.mxu0 0.0
      %614 = vmatmul.mubr.f32.gmra.mrb[0].mxu0 %v506
      %v615 = vpop.f32.mrb[0].mxu0
      %v616 = vadd.f32 %v542, %v615
      %v617 = vpop.f32.mrb[0].mxu0
      %618 = vmatprep.mubr.f32.mxu0 0.0
      %619 = vmatmul.mubr.f32.gmra.mrb[0].mxu0 %v507
      %v620 = vpop.f32.mrb[0].mxu0
      %v621 = vadd.f32 %v542, %v620
      %v622 = vpop.f32.mrb[0].mxu0
      %623 = vmatprep.mubr.f32.mxu0 0.0
      %624 = vmatmul.mubr.f32.gmra.mrb[0].mxu0 %v508
      %v625 = vpop.f32.mrb[0].mxu0
      %v626 = vadd.f32 %v542, %v625
      %v627 = vpop.f32.mrb[0].mxu0
      %628 = vmatprep.mubr.f32.mxu0 0.0
      %629 = vmatmul.mubr.f32.gmra.mrb[0].mxu0 %v509
      %v630 = vpop.f32.mrb[0].mxu0
      %v631 = vadd.f32 %v542, %v630
      %v632 = vpop.f32.mrb[0].mxu0
      %633 = vmatprep.mubr.f32.mxu0 0.0
      %634 = vmatmul.mubr.f32.gmra.mrb[0].mxu0 %v510
      %v635 = vpop.f32.mrb[0].mxu0
      %v636 = vadd.f32 %v542, %v635
      %v637 = vpop.f32.mrb[0].mxu0
      %638 = vmatprep.mubr.f32.mxu0 0.0
      %639 = vmatmul.mubr.f32.gmra.mrb[0].mxu0 %v511
      %v640 = vpop.f32.mrb[0].mxu0
      %v641 = vadd.f32 %v542, %v640
      %v642 = vpop.f32.mrb[0].mxu0
      %643 = vmatprep.mubr.f32.mxu0 0.0
      %644 = vmatmul.mubr.f32.gmra.mrb[0].mxu0 %v512
      %v645 = vpop.f32.mrb[0].mxu0
      %v646 = vadd.f32 %v542, %v645
      %v647 = vpop.f32.mrb[0].mxu0
      %648 = vmatprep.mubr.f32.mxu0 0.0
      %649 = vmatmul.mubr.f32.gmra.mrb[0].mxu0 %v513
      %v650 = vpop.f32.mrb[0].mxu0
      %v651 = vadd.f32 %v542, %v650
      %v652 = vpop.f32.mrb[0].mxu0
      %653 = vmatprep.mubr.f32.mxu0 0.0
      %654 = vmatmul.mubr.f32.gmra.mrb[0].mxu0 %v514
      %v655 = vpop.f32.mrb[0].mxu0
      %v656 = vadd.f32 %v542, %v655
      %v657 = vpop.f32.mrb[0].mxu0
      %658 = vmatprep.mubr.f32.mxu0 0.0
      %659 = vmatmul.mubr.f32.gmra.mrb[0].mxu0 %v515
      %v660 = vpop.f32.mrb[0].mxu0
      %v661 = vadd.f32 %v542, %v660
      %v662 = vpop.f32.mrb[0].mxu0
      %663 = vmatprep.mubr.f32.mxu0 0.0
      %664 = vmatmul.mubr.f32.gmra.mrb[0].mxu0 %v516
      %v665 = vpop.f32.mrb[0].mxu0
      %v666 = vadd.f32 %v542, %v665
      %v667 = vpop.f32.mrb[0].mxu0
      %668 = vmatprep.mubr.f32.mxu0 0.0
      %669 = vmatmul.mubr.f32.gmra.mrb[0].mxu0 %v517
      %v670 = vpop.f32.mrb[0].mxu0
      %v671 = vadd.f32 %v542, %v670
      %v672 = vpop.f32.mrb[0].mxu0
      %673 = vmatprep.mubr.f32.mxu0 0.0
      %674 = vmatmul.mubr.f32.gmra.mrb[0].mxu0 %v518
      %v675 = vpop.f32.mrb[0].mxu0
      %v676 = vadd.f32 %v542, %v675
      %v677 = vpop.f32.mrb[0].mxu0
      %678 = vmatprep.mubr.f32.mxu0 0.0
      %679 = vmatmul.mubr.f32.gmra.mrb[0].mxu0 %v519
      %v680 = vpop.f32.mrb[0].mxu0
      %v681 = vadd.f32 %v542, %v680
      %v682 = vpop.f32.mrb[0].mxu0
      %683 = vmatprep.mubr.f32.mxu0 0.0
      %684 = vmatmul.mubr.f32.gmra.mrb[0].mxu0 %v520
      %v685 = vpop.f32.mrb[0].mxu0
      %v686 = vadd.f32 %v542, %v685
      %v687 = vpop.f32.mrb[0].mxu0
      %688 = vdwg.mxu0
      %v689 = vmax.f32 %v611, 0.0
      %v690 = vmax.f32 %v616, 0.0
      %v691 = vmax.f32 %v621, 0.0
      %v692 = vmax.f32 %v626, 0.0
      %v693 = vmax.f32 %v631, 0.0
      %v694 = vmax.f32 %v636, 0.0
      %v695 = vmax.f32 %v641, 0.0
      %v696 = vmax.f32 %v646, 0.0
      %v697 = vmax.f32 %v651, 0.0
      %v698 = vmax.f32 %v656, 0.0
      %v699 = vmax.f32 %v661, 0.0
      %v700 = vmax.f32 %v666, 0.0
      %v701 = vmax.f32 %v671, 0.0
      %v702 = vmax.f32 %v676, 0.0
      %v703 = vmax.f32 %v681, 0.0
      %v704 = vmax.f32 %v686, 0.0
      %v705 = vld [vmem:[%s5] sm:$0xff]
      %v706 = vld [vmem:[%s5 + $0x8] sm:$0xff]
      %v707 = vld [vmem:[%s5 + $0x10] sm:$0xff]
      %v708 = vld [vmem:[%s5 + $0x18] sm:$0xff]
      %v709 = vld [vmem:[%s5 + $0x20] sm:$0xff]
      %v710 = vld [vmem:[%s5 + $0x28] sm:$0xff]
      %v711 = vld [vmem:[%s5 + $0x30] sm:$0xff]
      %v712 = vld [vmem:[%s5 + $0x38] sm:$0xff]
      %v713 = vld [vmem:[%s5 + $0x40] sm:$0xff]
      %v714 = vld [vmem:[%s5 + $0x48] sm:$0xff]
      %v715 = vld [vmem:[%s5 + $0x50] sm:$0xff]
      %v716 = vld [vmem:[%s5 + $0x58] sm:$0xff]
      %v717 = vld [vmem:[%s5 + $0x60] sm:$0xff]
      %v718 = vld [vmem:[%s5 + $0x68] sm:$0xff]
      %v719 = vld [vmem:[%s5 + $0x70] sm:$0xff]
      %v720 = vld [vmem:[%s5 + $0x78] sm:$0xff]
      %v721 = vld [vmem:[%s6] sm:$0x1]
      %v723 = vlaneseq
      %v724 = vshrl.u32 %v723, 7
      %v725 = vsub.s32 0, %v724
      %v726 = vrot.slane %v721, %v725
      %728 = vmatprep.subr.mxu0 0.0
      %729 = vmatpush1.msra.mxu0 %v705
      %730 = vmatprep.subr.mxu0 0.0
      %731 = vmatpush1.msra.mxu0 %v706
      %732 = vmatprep.subr.mxu0 0.0
      %733 = vmatpush1.msra.mxu0 %v707
      %734 = vmatprep.subr.mxu0 0.0
      %735 = vmatpush1.msra.mxu0 %v708
      %736 = vmatprep.subr.mxu0 0.0
      %737 = vmatpush1.msra.mxu0 %v709
      %738 = vmatprep.subr.mxu0 0.0
      %739 = vmatpush1.msra.mxu0 %v710
      %740 = vmatprep.subr.mxu0 0.0
      %741 = vmatpush1.msra.mxu0 %v711
      %742 = vmatprep.subr.mxu0 0.0
      %743 = vmatpush1.msra.mxu0 %v712
      %744 = vmatprep.subr.mxu0 0.0
      %745 = vmatpush1.msra.mxu0 %v713
      %746 = vmatprep.subr.mxu0 0.0
      %747 = vmatpush1.msra.mxu0 %v714
      %748 = vmatprep.subr.mxu0 0.0
      %749 = vmatpush1.msra.mxu0 %v715
      %750 = vmatprep.subr.mxu0 0.0
      %751 = vmatpush1.msra.mxu0 %v716
      %752 = vmatprep.subr.mxu0 0.0
      %753 = vmatpush1.msra.mxu0 %v717
      %754 = vmatprep.subr.mxu0 0.0
      %755 = vmatpush1.msra.mxu0 %v718
      %756 = vmatprep.subr.mxu0 0.0
      %757 = vmatpush1.msra.mxu0 %v719
      %758 = vmatprep.subr.mxu0 0.0
      %759 = vmatpush1.msra.mxu0 %v720
      %760 = vmatprep.subr.mxu0 0.0
      %761 = vmatpush1.msra.mxu0 0.0
      %762 = vmatprep.subr.mxu0 0.0
      %763 = vmatpush1.msra.mxu0 0.0
      %764 = vmatprep.subr.mxu0 0.0
      %765 = vmatpush1.msra.mxu0 0.0
      %766 = vmatprep.subr.mxu0 0.0
      %767 = vmatpush1.msra.mxu0 0.0
      %768 = vmatprep.subr.mxu0 0.0
      %769 = vmatpush1.msra.mxu0 0.0
      %770 = vmatprep.subr.mxu0 0.0
      %771 = vmatpush1.msra.mxu0 0.0
      %772 = vmatprep.subr.mxu0 0.0
      %773 = vmatpush1.msra.mxu0 0.0
      %774 = vmatprep.subr.mxu0 0.0
      %775 = vmatpush1.msra.mxu0 0.0
      %776 = vmatprep.subr.mxu0 0.0
      %777 = vmatpush1.msra.mxu0 0.0
      %778 = vmatprep.subr.mxu0 0.0
      %779 = vmatpush1.msra.mxu0 0.0
      %780 = vmatprep.subr.mxu0 0.0
      %781 = vmatpush1.msra.mxu0 0.0
      %782 = vmatprep.subr.mxu0 0.0
      %783 = vmatpush1.msra.mxu0 0.0
      %784 = vmatprep.subr.mxu0 0.0
      %785 = vmatpush1.msra.mxu0 0.0
      %786 = vmatprep.subr.mxu0 0.0
      %787 = vmatpush1.msra.mxu0 0.0
      %788 = vmatprep.subr.mxu0 0.0
      %789 = vmatpush1.msra.mxu0 0.0
      %790 = vmatprep.subr.mxu0 0.0
      %791 = vmatpush1.msra.mxu0 0.0
      %792 = vmatprep.mubr.f32.mxu0 0.0
      %793 = vmatmul.mubr.f32.gmra.mrb[0].mxu0 %v689
      %v794 = vpop.f32.mrb[0].mxu0
      %v795 = vadd.f32 %v726, %v794
      %v796 = vpop.f32.mrb[0].mxu0
      %797 = vmatprep.mubr.f32.mxu0 0.0
      %798 = vmatmul.mubr.f32.gmra.mrb[0].mxu0 %v690
      %v799 = vpop.f32.mrb[0].mxu0
      %v800 = vadd.f32 %v726, %v799
      %v801 = vpop.f32.mrb[0].mxu0
      %802 = vmatprep.mubr.f32.mxu0 0.0
      %803 = vmatmul.mubr.f32.gmra.mrb[0].mxu0 %v691
      %v804 = vpop.f32.mrb[0].mxu0
      %v805 = vadd.f32 %v726, %v804
      %v806 = vpop.f32.mrb[0].mxu0
      %807 = vmatprep.mubr.f32.mxu0 0.0
      %808 = vmatmul.mubr.f32.gmra.mrb[0].mxu0 %v692
      %v809 = vpop.f32.mrb[0].mxu0
      %v810 = vadd.f32 %v726, %v809
      %v811 = vpop.f32.mrb[0].mxu0
      %812 = vmatprep.mubr.f32.mxu0 0.0
      %813 = vmatmul.mubr.f32.gmra.mrb[0].mxu0 %v693
      %v814 = vpop.f32.mrb[0].mxu0
      %v815 = vadd.f32 %v726, %v814
      %v816 = vpop.f32.mrb[0].mxu0
      %817 = vmatprep.mubr.f32.mxu0 0.0
      %818 = vmatmul.mubr.f32.gmra.mrb[0].mxu0 %v694
      %v819 = vpop.f32.mrb[0].mxu0
      %v820 = vadd.f32 %v726, %v819
      %v821 = vpop.f32.mrb[0].mxu0
      %822 = vmatprep.mubr.f32.mxu0 0.0
      %823 = vmatmul.mubr.f32.gmra.mrb[0].mxu0 %v695
      %v824 = vpop.f32.mrb[0].mxu0
      %v825 = vadd.f32 %v726, %v824
      %v826 = vpop.f32.mrb[0].mxu0
      %827 = vmatprep.mubr.f32.mxu0 0.0
      %828 = vmatmul.mubr.f32.gmra.mrb[0].mxu0 %v696
      %v829 = vpop.f32.mrb[0].mxu0
      %v830 = vadd.f32 %v726, %v829
      %v831 = vpop.f32.mrb[0].mxu0
      %832 = vmatprep.mubr.f32.mxu0 0.0
      %833 = vmatmul.mubr.f32.gmra.mrb[0].mxu0 %v697
      %v834 = vpop.f32.mrb[0].mxu0
      %v835 = vadd.f32 %v726, %v834
      %v836 = vpop.f32.mrb[0].mxu0
      %837 = vmatprep.mubr.f32.mxu0 0.0
      %838 = vmatmul.mubr.f32.gmra.mrb[0].mxu0 %v698
      %v839 = vpop.f32.mrb[0].mxu0
      %v840 = vadd.f32 %v726, %v839
      %v841 = vpop.f32.mrb[0].mxu0
      %842 = vmatprep.mubr.f32.mxu0 0.0
      %843 = vmatmul.mubr.f32.gmra.mrb[0].mxu0 %v699
      %v844 = vpop.f32.mrb[0].mxu0
      %v845 = vadd.f32 %v726, %v844
      %v846 = vpop.f32.mrb[0].mxu0
      %847 = vmatprep.mubr.f32.mxu0 0.0
      %848 = vmatmul.mubr.f32.gmra.mrb[0].mxu0 %v700
      %v849 = vpop.f32.mrb[0].mxu0
      %v850 = vadd.f32 %v726, %v849
      %v851 = vpop.f32.mrb[0].mxu0
      %852 = vmatprep.mubr.f32.mxu0 0.0
      %853 = vmatmul.mubr.f32.gmra.mrb[0].mxu0 %v701
      %v854 = vpop.f32.mrb[0].mxu0
      %v855 = vadd.f32 %v726, %v854
      %v856 = vpop.f32.mrb[0].mxu0
      %857 = vmatprep.mubr.f32.mxu0 0.0
      %858 = vmatmul.mubr.f32.gmra.mrb[0].mxu0 %v702
      %v859 = vpop.f32.mrb[0].mxu0
      %v860 = vadd.f32 %v726, %v859
      %v861 = vpop.f32.mrb[0].mxu0
      %862 = vmatprep.mubr.f32.mxu0 0.0
      %863 = vmatmul.mubr.f32.gmra.mrb[0].mxu0 %v703
      %v864 = vpop.f32.mrb[0].mxu0
      %v865 = vadd.f32 %v726, %v864
      %v866 = vpop.f32.mrb[0].mxu0
      %867 = vmatprep.mubr.f32.mxu0 0.0
      %868 = vmatmul.mubr.f32.gmra.mrb[0].mxu0 %v704
      %v869 = vpop.f32.mrb[0].mxu0
      %v870 = vadd.f32 %v726, %v869
      %v871 = vpop.f32.mrb[0].mxu0
      %872 = vdwg.mxu0
      %v873 = vlaneseq
      %v874 = vand.u32 %v873, 127
      %875 = vmax.xlane.f32.xlu0 %v795
      %v876 = vpop.xlane.xlu0 %875
      %877 = vmax.xlane.f32.xlu0 %v800
      %v878 = vpop.xlane.xlu0 %877
      %879 = vmax.xlane.f32.xlu0 %v805
      %v880 = vpop.xlane.xlu0 %879
      %881 = vmax.xlane.f32.xlu0 %v810
      %v882 = vpop.xlane.xlu0 %881
      %883 = vmax.xlane.f32.xlu0 %v815
      %v884 = vpop.xlane.xlu0 %883
      %885 = vmax.xlane.f32.xlu0 %v820
      %v886 = vpop.xlane.xlu0 %885
      %887 = vmax.xlane.f32.xlu0 %v825
      %v888 = vpop.xlane.xlu0 %887
      %889 = vmax.xlane.f32.xlu0 %v830
      %v890 = vpop.xlane.xlu0 %889
      %891 = vmax.xlane.f32.xlu0 %v835
      %v892 = vpop.xlane.xlu0 %891
      %893 = vmax.xlane.f32.xlu0 %v840
      %v894 = vpop.xlane.xlu0 %893
      %895 = vmax.xlane.f32.xlu0 %v845
      %v896 = vpop.xlane.xlu0 %895
      %897 = vmax.xlane.f32.xlu0 %v850
      %v898 = vpop.xlane.xlu0 %897
      %899 = vmax.xlane.f32.xlu0 %v855
      %v900 = vpop.xlane.xlu0 %899
      %901 = vmax.xlane.f32.xlu0 %v860
      %v902 = vpop.xlane.xlu0 %901
      %903 = vmax.xlane.f32.xlu0 %v865
      %v904 = vpop.xlane.xlu0 %903
      %905 = vmax.xlane.f32.xlu0 %v870
      %v906 = vpop.xlane.xlu0 %905
      %vm907 = vcmp.eq.f32.partialorder %v795, %v876
      %vm908 = vcmp.eq.f32.partialorder %v800, %v878
      %vm909 = vcmp.eq.f32.partialorder %v805, %v880
      %vm910 = vcmp.eq.f32.partialorder %v810, %v882
      %vm911 = vcmp.eq.f32.partialorder %v815, %v884
      %vm912 = vcmp.eq.f32.partialorder %v820, %v886
      %vm913 = vcmp.eq.f32.partialorder %v825, %v888
      %vm914 = vcmp.eq.f32.partialorder %v830, %v890
      %vm915 = vcmp.eq.f32.partialorder %v835, %v892
      %vm916 = vcmp.eq.f32.partialorder %v840, %v894
      %vm917 = vcmp.eq.f32.partialorder %v845, %v896
      %vm918 = vcmp.eq.f32.partialorder %v850, %v898
      %vm919 = vcmp.eq.f32.partialorder %v855, %v900
      %vm920 = vcmp.eq.f32.partialorder %v860, %v902
      %vm921 = vcmp.eq.f32.partialorder %v865, %v904
      %vm922 = vcmp.eq.f32.partialorder %v870, %v906
      %v923 = vsel %vm907, %v874, 128
      %v924 = vsel %vm908, %v874, 128
      %v925 = vsel %vm909, %v874, 128
      %v926 = vsel %vm910, %v874, 128
      %v927 = vsel %vm911, %v874, 128
      %v928 = vsel %vm912, %v874, 128
      %v929 = vsel %vm913, %v874, 128
      %v930 = vsel %vm914, %v874, 128
      %v931 = vsel %vm915, %v874, 128
      %v932 = vsel %vm916, %v874, 128
      %v933 = vsel %vm917, %v874, 128
      %v934 = vsel %vm918, %v874, 128
      %v935 = vsel %vm919, %v874, 128
      %v936 = vsel %vm920, %v874, 128
      %v937 = vsel %vm921, %v874, 128
      %v938 = vsel %vm922, %v874, 128
      %v939 = vand.u32 %v923, 65535
      %v940 = vshra.s32 %v923, 16
      %v941 = vcvt.s32.f32 %v939
      %v942 = vcvt.s32.f32 %v940
      %943 = vmin.xlane.f32.xlu0 %v942
      %v944 = vpop.xlane.xlu0 %943
      %vm945 = vcmp.eq.f32.partialorder %v942, %v944
      %v946 = vsel %vm945, %v941, inf
      %947 = vmin.xlane.f32.xlu0 %v946
      %v948 = vpop.xlane.xlu0 %947
      %v949 = vcvt.f32.s32 %v948
      %v950 = vcvt.f32.s32 %v944
      %v951 = vshll.u32 %v950, 16
      %v952 = vadd.s32 %v951, %v949
      %v953 = vand.u32 %v924, 65535
      %v954 = vshra.s32 %v924, 16
      %v955 = vcvt.s32.f32 %v953
      %v956 = vcvt.s32.f32 %v954
      %957 = vmin.xlane.f32.xlu0 %v956
      %v958 = vpop.xlane.xlu0 %957
      %vm959 = vcmp.eq.f32.partialorder %v956, %v958
      %v960 = vsel %vm959, %v955, inf
      %961 = vmin.xlane.f32.xlu0 %v960
      %v962 = vpop.xlane.xlu0 %961
      %v963 = vcvt.f32.s32 %v962
      %v964 = vcvt.f32.s32 %v958
      %v965 = vshll.u32 %v964, 16
      %v966 = vadd.s32 %v965, %v963
      %v967 = vand.u32 %v925, 65535
      %v968 = vshra.s32 %v925, 16
      %v969 = vcvt.s32.f32 %v967
      %v970 = vcvt.s32.f32 %v968
      %971 = vmin.xlane.f32.xlu0 %v970
      %v972 = vpop.xlane.xlu0 %971
      %vm973 = vcmp.eq.f32.partialorder %v970, %v972
      %v974 = vsel %vm973, %v969, inf
      %975 = vmin.xlane.f32.xlu0 %v974
      %v976 = vpop.xlane.xlu0 %975
      %v977 = vcvt.f32.s32 %v976
      %v978 = vcvt.f32.s32 %v972
      %v979 = vshll.u32 %v978, 16
      %v980 = vadd.s32 %v979, %v977
      %v981 = vand.u32 %v926, 65535
      %v982 = vshra.s32 %v926, 16
      %v983 = vcvt.s32.f32 %v981
      %v984 = vcvt.s32.f32 %v982
      %985 = vmin.xlane.f32.xlu0 %v984
      %v986 = vpop.xlane.xlu0 %985
      %vm987 = vcmp.eq.f32.partialorder %v984, %v986
      %v988 = vsel %vm987, %v983, inf
      %989 = vmin.xlane.f32.xlu0 %v988
      %v990 = vpop.xlane.xlu0 %989
      %v991 = vcvt.f32.s32 %v990
      %v992 = vcvt.f32.s32 %v986
      %v993 = vshll.u32 %v992, 16
      %v994 = vadd.s32 %v993, %v991
      %v995 = vand.u32 %v927, 65535
      %v996 = vshra.s32 %v927, 16
      %v997 = vcvt.s32.f32 %v995
      %v998 = vcvt.s32.f32 %v996
      %999 = vmin.xlane.f32.xlu0 %v998
      %v1000 = vpop.xlane.xlu0 %999
      %vm1001 = vcmp.eq.f32.partialorder %v998, %v1000
      %v1002 = vsel %vm1001, %v997, inf
      %1003 = vmin.xlane.f32.xlu0 %v1002
      %v1004 = vpop.xlane.xlu0 %1003
      %v1005 = vcvt.f32.s32 %v1004
      %v1006 = vcvt.f32.s32 %v1000
      %v1007 = vshll.u32 %v1006, 16
      %v1008 = vadd.s32 %v1007, %v1005
      %v1009 = vand.u32 %v928, 65535
      %v1010 = vshra.s32 %v928, 16
      %v1011 = vcvt.s32.f32 %v1009
      %v1012 = vcvt.s32.f32 %v1010
      %1013 = vmin.xlane.f32.xlu0 %v1012
      %v1014 = vpop.xlane.xlu0 %1013
      %vm1015 = vcmp.eq.f32.partialorder %v1012, %v1014
      %v1016 = vsel %vm1015, %v1011, inf
      %1017 = vmin.xlane.f32.xlu0 %v1016
      %v1018 = vpop.xlane.xlu0 %1017
      %v1019 = vcvt.f32.s32 %v1018
      %v1020 = vcvt.f32.s32 %v1014
      %v1021 = vshll.u32 %v1020, 16
      %v1022 = vadd.s32 %v1021, %v1019
      %v1023 = vand.u32 %v929, 65535
      %v1024 = vshra.s32 %v929, 16
      %v1025 = vcvt.s32.f32 %v1023
      %v1026 = vcvt.s32.f32 %v1024
      %1027 = vmin.xlane.f32.xlu0 %v1026
      %v1028 = vpop.xlane.xlu0 %1027
      %vm1029 = vcmp.eq.f32.partialorder %v1026, %v1028
      %v1030 = vsel %vm1029, %v1025, inf
      %1031 = vmin.xlane.f32.xlu0 %v1030
      %v1032 = vpop.xlane.xlu0 %1031
      %v1033 = vcvt.f32.s32 %v1032
      %v1034 = vcvt.f32.s32 %v1028
      %v1035 = vshll.u32 %v1034, 16
      %v1036 = vadd.s32 %v1035, %v1033
      %v1037 = vand.u32 %v930, 65535
      %v1038 = vshra.s32 %v930, 16
      %v1039 = vcvt.s32.f32 %v1037
      %v1040 = vcvt.s32.f32 %v1038
      %1041 = vmin.xlane.f32.xlu0 %v1040
      %v1042 = vpop.xlane.xlu0 %1041
      %vm1043 = vcmp.eq.f32.partialorder %v1040, %v1042
      %v1044 = vsel %vm1043, %v1039, inf
      %1045 = vmin.xlane.f32.xlu0 %v1044
      %v1046 = vpop.xlane.xlu0 %1045
      %v1047 = vcvt.f32.s32 %v1046
      %v1048 = vcvt.f32.s32 %v1042
      %v1049 = vshll.u32 %v1048, 16
      %v1050 = vadd.s32 %v1049, %v1047
      %v1051 = vand.u32 %v931, 65535
      %v1052 = vshra.s32 %v931, 16
      %v1053 = vcvt.s32.f32 %v1051
      %v1054 = vcvt.s32.f32 %v1052
      %1055 = vmin.xlane.f32.xlu0 %v1054
      %v1056 = vpop.xlane.xlu0 %1055
      %vm1057 = vcmp.eq.f32.partialorder %v1054, %v1056
      %v1058 = vsel %vm1057, %v1053, inf
      %1059 = vmin.xlane.f32.xlu0 %v1058
      %v1060 = vpop.xlane.xlu0 %1059
      %v1061 = vcvt.f32.s32 %v1060
      %v1062 = vcvt.f32.s32 %v1056
      %v1063 = vshll.u32 %v1062, 16
      %v1064 = vadd.s32 %v1063, %v1061
      %v1065 = vand.u32 %v932, 65535
      %v1066 = vshra.s32 %v932, 16
      %v1067 = vcvt.s32.f32 %v1065
      %v1068 = vcvt.s32.f32 %v1066
      %1069 = vmin.xlane.f32.xlu0 %v1068
      %v1070 = vpop.xlane.xlu0 %1069
      %vm1071 = vcmp.eq.f32.partialorder %v1068, %v1070
      %v1072 = vsel %vm1071, %v1067, inf
      %1073 = vmin.xlane.f32.xlu0 %v1072
      %v1074 = vpop.xlane.xlu0 %1073
      %v1075 = vcvt.f32.s32 %v1074
      %v1076 = vcvt.f32.s32 %v1070
      %v1077 = vshll.u32 %v1076, 16
      %v1078 = vadd.s32 %v1077, %v1075
      %v1079 = vand.u32 %v933, 65535
      %v1080 = vshra.s32 %v933, 16
      %v1081 = vcvt.s32.f32 %v1079
      %v1082 = vcvt.s32.f32 %v1080
      %1083 = vmin.xlane.f32.xlu0 %v1082
      %v1084 = vpop.xlane.xlu0 %1083
      %vm1085 = vcmp.eq.f32.partialorder %v1082, %v1084
      %v1086 = vsel %vm1085, %v1081, inf
      %1087 = vmin.xlane.f32.xlu0 %v1086
      %v1088 = vpop.xlane.xlu0 %1087
      %v1089 = vcvt.f32.s32 %v1088
      %v1090 = vcvt.f32.s32 %v1084
      %v1091 = vshll.u32 %v1090, 16
      %v1092 = vadd.s32 %v1091, %v1089
      %v1093 = vand.u32 %v934, 65535
      %v1094 = vshra.s32 %v934, 16
      %v1095 = vcvt.s32.f32 %v1093
      %v1096 = vcvt.s32.f32 %v1094
      %1097 = vmin.xlane.f32.xlu0 %v1096
      %v1098 = vpop.xlane.xlu0 %1097
      %vm1099 = vcmp.eq.f32.partialorder %v1096, %v1098
      %v1100 = vsel %vm1099, %v1095, inf
      %1101 = vmin.xlane.f32.xlu0 %v1100
      %v1102 = vpop.xlane.xlu0 %1101
      %v1103 = vcvt.f32.s32 %v1102
      %v1104 = vcvt.f32.s32 %v1098
      %v1105 = vshll.u32 %v1104, 16
      %v1106 = vadd.s32 %v1105, %v1103
      %v1107 = vand.u32 %v935, 65535
      %v1108 = vshra.s32 %v935, 16
      %v1109 = vcvt.s32.f32 %v1107
      %v1110 = vcvt.s32.f32 %v1108
      %1111 = vmin.xlane.f32.xlu0 %v1110
      %v1112 = vpop.xlane.xlu0 %1111
      %vm1113 = vcmp.eq.f32.partialorder %v1110, %v1112
      %v1114 = vsel %vm1113, %v1109, inf
      %1115 = vmin.xlane.f32.xlu0 %v1114
      %v1116 = vpop.xlane.xlu0 %1115
      %v1117 = vcvt.f32.s32 %v1116
      %v1118 = vcvt.f32.s32 %v1112
      %v1119 = vshll.u32 %v1118, 16
      %v1120 = vadd.s32 %v1119, %v1117
      %v1121 = vand.u32 %v936, 65535
      %v1122 = vshra.s32 %v936, 16
      %v1123 = vcvt.s32.f32 %v1121
      %v1124 = vcvt.s32.f32 %v1122
      %1125 = vmin.xlane.f32.xlu0 %v1124
      %v1126 = vpop.xlane.xlu0 %1125
      %vm1127 = vcmp.eq.f32.partialorder %v1124, %v1126
      %v1128 = vsel %vm1127, %v1123, inf
      %1129 = vmin.xlane.f32.xlu0 %v1128
      %v1130 = vpop.xlane.xlu0 %1129
      %v1131 = vcvt.f32.s32 %v1130
      %v1132 = vcvt.f32.s32 %v1126
      %v1133 = vshll.u32 %v1132, 16
      %v1134 = vadd.s32 %v1133, %v1131
      %v1135 = vand.u32 %v937, 65535
      %v1136 = vshra.s32 %v937, 16
      %v1137 = vcvt.s32.f32 %v1135
      %v1138 = vcvt.s32.f32 %v1136
      %1139 = vmin.xlane.f32.xlu0 %v1138
      %v1140 = vpop.xlane.xlu0 %1139
      %vm1141 = vcmp.eq.f32.partialorder %v1138, %v1140
      %v1142 = vsel %vm1141, %v1137, inf
      %1143 = vmin.xlane.f32.xlu0 %v1142
      %v1144 = vpop.xlane.xlu0 %1143
      %v1145 = vcvt.f32.s32 %v1144
      %v1146 = vcvt.f32.s32 %v1140
      %v1147 = vshll.u32 %v1146, 16
      %v1148 = vadd.s32 %v1147, %v1145
      %v1149 = vand.u32 %v938, 65535
      %v1150 = vshra.s32 %v938, 16
      %v1151 = vcvt.s32.f32 %v1149
      %v1152 = vcvt.s32.f32 %v1150
      %1153 = vmin.xlane.f32.xlu0 %v1152
      %v1154 = vpop.xlane.xlu0 %1153
      %vm1155 = vcmp.eq.f32.partialorder %v1152, %v1154
      %v1156 = vsel %vm1155, %v1151, inf
      %1157 = vmin.xlane.f32.xlu0 %v1156
      %v1158 = vpop.xlane.xlu0 %1157
      %v1159 = vcvt.f32.s32 %v1158
      %v1160 = vcvt.f32.s32 %v1154
      %v1161 = vshll.u32 %v1160, 16
      %v1162 = vadd.s32 %v1161, %v1159
      %vm1163 = vcmp.eq.s32.totalorder %v874, %v952
      %vm1164 = vcmp.eq.s32.totalorder %v874, %v966
      %vm1165 = vcmp.eq.s32.totalorder %v874, %v980
      %vm1166 = vcmp.eq.s32.totalorder %v874, %v994
      %vm1167 = vcmp.eq.s32.totalorder %v874, %v1008
      %vm1168 = vcmp.eq.s32.totalorder %v874, %v1022
      %vm1169 = vcmp.eq.s32.totalorder %v874, %v1036
      %vm1170 = vcmp.eq.s32.totalorder %v874, %v1050
      %vm1171 = vcmp.eq.s32.totalorder %v874, %v1064
      %vm1172 = vcmp.eq.s32.totalorder %v874, %v1078
      %vm1173 = vcmp.eq.s32.totalorder %v874, %v1092
      %vm1174 = vcmp.eq.s32.totalorder %v874, %v1106
      %vm1175 = vcmp.eq.s32.totalorder %v874, %v1120
      %vm1176 = vcmp.eq.s32.totalorder %v874, %v1134
      %vm1177 = vcmp.eq.s32.totalorder %v874, %v1148
      %vm1178 = vcmp.eq.s32.totalorder %v874, %v1162
      %v1179 = vsel %vm1163, 1, 0
      %v1180 = vsel %vm1164, 1, 0
      %v1181 = vsel %vm1165, 1, 0
      %v1182 = vsel %vm1166, 1, 0
      %v1183 = vsel %vm1167, 1, 0
      %v1184 = vsel %vm1168, 1, 0
      %v1185 = vsel %vm1169, 1, 0
      %v1186 = vsel %vm1170, 1, 0
      %v1187 = vsel %vm1171, 1, 0
      %v1188 = vsel %vm1172, 1, 0
      %v1189 = vsel %vm1173, 1, 0
      %v1190 = vsel %vm1174, 1, 0
      %v1191 = vsel %vm1175, 1, 0
      %v1192 = vsel %vm1176, 1, 0
      %v1193 = vsel %vm1177, 1, 0
      %v1194 = vsel %vm1178, 1, 0
      %v1195 = vcvt.s32.f32 %v1179
      %v1196 = vcvt.s32.f32 %v1180
      %v1197 = vcvt.s32.f32 %v1181
      %v1198 = vcvt.s32.f32 %v1182
      %v1199 = vcvt.s32.f32 %v1183
      %v1200 = vcvt.s32.f32 %v1184
      %v1201 = vcvt.s32.f32 %v1185
      %v1202 = vcvt.s32.f32 %v1186
      %v1203 = vcvt.s32.f32 %v1187
      %v1204 = vcvt.s32.f32 %v1188
      %v1205 = vcvt.s32.f32 %v1189
      %v1206 = vcvt.s32.f32 %v1190
      %v1207 = vcvt.s32.f32 %v1191
      %v1208 = vcvt.s32.f32 %v1192
      %v1209 = vcvt.s32.f32 %v1193
      %v1210 = vcvt.s32.f32 %v1194
      %1211 = vst [vmem:[%s280] sm:$0xff] %v1195
      %1212 = vst [vmem:[%s280 + $0x8] sm:$0xff] %v1196
      %1213 = vst [vmem:[%s280 + $0x10] sm:$0xff] %v1197
      %1214 = vst [vmem:[%s280 + $0x18] sm:$0xff] %v1198
      %1215 = vst [vmem:[%s280 + $0x20] sm:$0xff] %v1199
      %1216 = vst [vmem:[%s280 + $0x28] sm:$0xff] %v1200
      %1217 = vst [vmem:[%s280 + $0x30] sm:$0xff] %v1201
      %1218 = vst [vmem:[%s280 + $0x38] sm:$0xff] %v1202
      %1219 = vst [vmem:[%s280 + $0x40] sm:$0xff] %v1203
      %1220 = vst [vmem:[%s280 + $0x48] sm:$0xff] %v1204
      %1221 = vst [vmem:[%s280 + $0x50] sm:$0xff] %v1205
      %1222 = vst [vmem:[%s280 + $0x58] sm:$0xff] %v1206
      %1223 = vst [vmem:[%s280 + $0x60] sm:$0xff] %v1207
      %1224 = vst [vmem:[%s280 + $0x68] sm:$0xff] %v1208
      %1225 = vst [vmem:[%s280 + $0x70] sm:$0xff] %v1209
      %1226 = vst [vmem:[%s280 + $0x78] sm:$0xff] %v1210
      %s1227 = smul.u32 16, %s18
      %p1228 = scmp.lt.s32.totalorder %s1227, 31
      %s1229 = scalar_select %p1228, %s1227, 31
      %s1230 = smul.addr %s1229, 8
      %s1231 = scalar_lea.vmem %s7, %s1230
      // Predicated region
      $region49: #{brain_forward.1} parent=47 // pred_check
        %p1232 = pneg %p188
      $region50: #{brain_forward.1} parent=47 // pred_check_branch
        %1234 = sbr.rel (%p1232) target = $region52
      $region51: #{brain_forward.1} parent=47 // pred_region
        %s1235 = smul.u32 16, %s18
      $region52: #{brain_forward.1} parent=47 // pred_fallthru
        _
    $region48: #{brain_forward.1} parent=5 // pred_fallthru
      _
    %p1236 = scmp.le.s32.totalorder 2, %s13
    // Predicated region
    $region53: #{brain_forward.1} parent=5 // pred_check
      %p1237 = pneg %p1236
    $region54: #{brain_forward.1} parent=5 // pred_check_branch
      %1239 = sbr.rel (%p1237) target = $region56
    $region55: #{brain_forward.1} parent=5 // pred_region
      %s1240 = ssub.s32 %s13, 2
      // Predicated region
      $region57: #{brain_forward.1} parent=55 // pred_check
        %p1241 = pneg %p194
      $region58: #{brain_forward.1} parent=55 // pred_check_branch
        %1243 = sbr.rel (%p1241) target = $region60
      $region59: #{brain_forward.1} parent=55 // pred_region
        %s1244 = smul.u32 16, %s19
        %p1245 = scmp.lt.s32.totalorder %s1244, 31
        %s1246 = scalar_select %p1245, %s1244, 31
        %s1247 = smul.addr %s1246, 8
        %s1248 = scalar_lea.vmem %s7, %s1247
      $region60: #{brain_forward.1} parent=55 // pred_fallthru
        _
    $region56: #{brain_forward.1} parent=5 // pred_fallthru
      _
  $region6: #{brain_forward.1} parent=0 // loop_footer
    %s17 = sadd.s32 1, %s13
  $region7: #{brain_forward.1} parent=0 // loop_footer_branch
    %12 = sbr.rel target = $region3
  $region8: #{brain_forward.1} parent=0 // loop_exit
    _

</llo_original>
